<compile_context>
chip_gen: v7x
topology: tpu7x:2x2x1
jax: 0.10.0
libtpu: 0.0.40
codegen_flags: <defaults>
</compile_context>

<pallas_src>
import functools

import jax
import jax.numpy as jnp
from jax.experimental import pallas as pl
from jax.experimental.pallas import tpu as pltpu


# ----------------------------- fused kernel ---------------------------------
def value_head_kernel(x_ref, wc_ref, shift_ref, w1_ref, b1_ref, w2_ref, b2_ref,
                      o_ref, acc_ref, *, n_in, group, hw):
    """One grid step = one group of `group` conv output channels.

    x_ref    : (B, C*HW)          f32  VMEM   input, resident across the grid
    wc_ref   : (32*C,)            f32  SMEM   conv1x1 weight, BN scale folded, flat [c*C+k]
    shift_ref: (32,)              f32  SMEM   BN shift = beta - mean * scale
    w1_ref   : (1, g*HW, 512)     bf16 VMEM   streamed fc1 weight slice for this group
    b1_ref   : (1, 512)           f32  VMEM
    w2_ref   : (1, 512)           f32  VMEM   fc2 weight (row vector)
    b2_ref   : (1, 1)             f32  VMEM
    o_ref    : (B, 1)             f32  VMEM   output (written on last step only)
    acc_ref  : (B, 512)           f32  VMEM   scratch accumulator
    """
    gi = pl.program_id(0)

    @pl.when(gi == 0)
    def _init():
        acc_ref[...] = jnp.zeros_like(acc_ref)

    C = n_in
    base = gi * group

    # Hoist this step's scalar operands (g*C conv weights + g shifts) from SMEM.
    w_sc = [[wc_ref[(base + cl) * C + k] for k in range(C)] for cl in range(group)]
    s_sc = [shift_ref[base + cl] for cl in range(group)]

    # Input channel planes, sliced from the lane-dense (B, C*HW) block (VMEM reads only).
    x_planes = [x_ref[:, pl.ds(k * hw, hw)] for k in range(C)]          # each (B, HW) f32

    # Build the g conv+BN+ReLU planes on the VPU and lay them out in flatten order.
    planes = []
    for cl in range(group):
        h_c = x_planes[0] * w_sc[cl][0]
        for k in range(1, C):
            h_c = h_c + x_planes[k] * w_sc[cl][k]
        planes.append(jnp.maximum(h_c + s_sc[cl], 0.0))                 # (B, HW) f32
    h = jnp.concatenate(planes, axis=-1)                                # (B, g*HW) f32

    # One K = g*HW contraction on the MXU against this step's streamed fc1 slice.
    acc_ref[...] += jnp.dot(h.astype(w1_ref.dtype), w1_ref[0],
                            preferred_element_type=jnp.float32)         # (B, 512) f32

    @pl.when(gi == pl.num_programs(0) - 1)
    def _finalize():
        z = jnp.maximum(acc_ref[...] + b1_ref[...], 0.0)                # (B, 512) f32
        # fc2 (512 -> 1) as VPU multiply + lane reduction (avoids an N=1 MXU matmul).
        out = jnp.sum(z * w2_ref[...], axis=-1, keepdims=True) + b2_ref[...]
        o_ref[...] = jnp.tanh(out)                                      # (B, 1)


# ----------------------------- wrapper ---------------------------------------
@jax.jit
def value_head_forward(x, kparams):
    """x: (B, C, H, W) float32 (NCHW, like PyTorch). Returns (B, 1) = tanh(value)."""
    B, C, H, W = x.shape
    HW = H * W

    w1 = kparams["w1"]                      # (n_groups, group*HW, hidden) bf16
    n_groups, g_hw, hidden = w1.shape
    assert g_hw % HW == 0
    group = g_hw // HW
    n_conv_out = kparams["shift"].shape[0]
    assert n_groups * group == n_conv_out

    # Free reshape of contiguous NCHW -> lane-dense (B, C*HW); no transpose, no extra HBM op.
    x_flat = x.reshape(B, C * HW)

    kernel = functools.partial(value_head_kernel, n_in=C, group=group, hw=HW)
    return pl.pallas_call(
        kernel,
        out_shape=jax.ShapeDtypeStruct((B, 1), jnp.float32),
        grid=(n_groups,),
        in_specs=[
            pl.BlockSpec((B, C * HW), lambda gi: (0, 0)),                 # x (resident)
            pl.BlockSpec(memory_space=pltpu.MemorySpace.SMEM),            # wc  (32*C,)
            pl.BlockSpec(memory_space=pltpu.MemorySpace.SMEM),            # shift (32,)
            pl.BlockSpec((1, group * HW, hidden), lambda gi: (gi, 0, 0)), # w1 (streamed, dbl-buf)
            pl.BlockSpec((1, hidden), lambda gi: (0, 0)),                 # b1
            pl.BlockSpec((1, hidden), lambda gi: (0, 0)),                 # w2
            pl.BlockSpec((1, 1), lambda gi: (0, 0)),                      # b2
        ],
        out_specs=pl.BlockSpec((B, 1), lambda gi: (0, 0)),
        scratch_shapes=[pltpu.VMEM((B, hidden), jnp.float32)],            # accumulator
        compiler_params=pltpu.CompilerParams(
            dimension_semantics=("arbitrary",),          # reduction axis (accumulator carried)
            vmem_limit_bytes=32 * 1024 * 1024),          # conservative: safe on v7x's 64 MiB
    )(x_flat, kparams["wc"], kparams["shift"], kparams["w1"],
      kparams["b1"], kparams["w2"], kparams["b2"])


# ----------------------- parameters (torch layout) ----------------------------
def init_torch_params(key, in_channels, H, W):
    """Deterministic, non-trivial parameters in PyTorch layout."""
    HW = H * W
    ks = jax.random.split(key, 7)
    conv_w = jax.random.normal(ks[0], (32, in_channels), jnp.float32) * 0.1  # (32,C,1,1) squeezed
    gamma = 1.0 + 0.1 * jax.random.normal(ks[1], (32,), jnp.float32)
    beta = 0.05 * jax.random.normal(ks[2], (32,), jnp.float32)
    running_mean = 0.1 * jax.random.normal(ks[3], (32,), jnp.float32)
    running_var = 1.0 + 0.2 * jax.random.uniform(ks[4], (32,), jnp.float32)
    fc1_w = jax.random.normal(ks[5], (512, 32 * HW), jnp.float32) * 0.02
    fc1_b = jnp.full((512,), 0.01, jnp.float32)
    fc2_w = jax.random.normal(ks[6], (1, 512), jnp.float32) * 0.02
    fc2_b = jnp.zeros((1,), jnp.float32)
    return dict(conv_w=conv_w, gamma=gamma, beta=beta, running_mean=running_mean,
                running_var=running_var, eps=1e-5,
                fc1_w=fc1_w, fc1_b=fc1_b, fc2_w=fc2_w, fc2_b=fc2_b)


def _pick_group(hw, n_conv_out=32, target_k=256):
    """Smallest power-of-two channel group with g*HW >= target_k (use target_k=128 on v5e)."""
    g = 1
    while g < n_conv_out and g * hw < target_k:
        g *= 2
    return min(g, n_conv_out)


def prepare_kernel_params(p, H, W, group=None):
    """One-time prep: fold BN into conv, group+permute fc1 to flatten order, cast to bf16."""
    HW = H * W
    n_conv_out = p["gamma"].shape[0]
    hidden = p["fc1_w"].shape[0]
    if group is None:
        group = _pick_group(HW, n_conv_out)
    assert n_conv_out % group == 0
    n_groups = n_conv_out // group

    scale = p["gamma"] / jnp.sqrt(p["running_var"] + p["eps"])        # (32,)
    shift = p["beta"] - p["running_mean"] * scale                     # (32,)
    wc = (p["conv_w"] * scale[:, None]).reshape(-1)                   # (32*C,) flat for SMEM
    # w1[gi, c_local*HW + s, j] = fc1_w[j, (gi*group + c_local)*HW + s]
    # (matches nn.Flatten of the NCHW conv output).
    w1 = (p["fc1_w"].reshape(hidden, n_groups, group * HW)
          .transpose(1, 2, 0).astype(jnp.bfloat16))                   # (n_groups, g*HW, 512)
    return dict(
        wc=wc,
        shift=shift,
        w1=w1,
        b1=p["fc1_b"].reshape(1, hidden),
        w2=p["fc2_w"].astype(jnp.float32),                            # (1, 512)
        b2=p["fc2_b"].reshape(1, 1),
    )


# ----------------------------- reference -------------------------------------
def reference_forward(x, p):
    """Plain-JAX f32 reference with exact PyTorch ValueHead semantics (eval mode)."""
    B, C, H, W = x.shape
    HW = H * W
    scale = p["gamma"] / jnp.sqrt(p["running_var"] + p["eps"])
    shift = p["beta"] - p["running_mean"] * scale
    h = jnp.einsum("oc,bcs->bos", p["conv_w"], x.reshape(B, C, HW))
    h = jnp.maximum(h * scale[None, :, None] + shift[None, :, None], 0.0)
    z = jnp.maximum(h.reshape(B, 32 * HW) @ p["fc1_w"].T + p["fc1_b"], 0.0)
    out = z @ p["fc2_w"].T + p["fc2_b"]
    return jnp.tanh(out)


if __name__ == "__main__":
    B, C, H, W = 2, 4, 8, 8   # HW=64 -> group=4, K=256, grid=(8,)

    key = jax.random.PRNGKey(0)
    kx, kp = jax.random.split(key)
    x = jax.random.normal(kx, (B, C, H, W), jnp.float32)

    torch_params = init_torch_params(kp, C, H, W)
    kparams = prepare_kernel_params(torch_params, H, W)

    out = jax.block_until_ready(value_head_forward(x, kparams))
    assert out.shape == (B, 1), out.shape

    ref = reference_forward(x, torch_params)
    # Tolerance covers bf16 storage of the fc1 weight and the bf16 MXU operands
    # (accumulation is f32); everything else is exact f32.
    assert jnp.allclose(out, ref, atol=5e-3, rtol=5e-3), (out, ref)

    print("KERNEL_OK")
</pallas_src>

<mosaic_0001>
module attributes {stable_mosaic.version = 11 : i64} {
  func.func @value_head_kernel(%arg0: i32, %arg1: memref<2x256xf32, #tpu.memory_space<vmem>>, %arg2: memref<128xf32, #tpu.memory_space<smem>>, %arg3: memref<32xf32, #tpu.memory_space<smem>>, %arg4: memref<1x256x512xbf16, #tpu.memory_space<vmem>>, %arg5: memref<1x512xf32, #tpu.memory_space<vmem>>, %arg6: memref<1x512xf32, #tpu.memory_space<vmem>>, %arg7: memref<1x1xf32, #tpu.memory_space<vmem>>, %arg8: memref<2x1xf32, #tpu.memory_space<vmem>>, %arg9: memref<2x512xf32, #tpu.memory_space<vmem>>) attributes {dimension_semantics = [#tpu.dimension_semantics<arbitrary>], iteration_bounds = array<i64: 8>, scalar_prefetch = 0 : i64, scratch_operands = 1 : i64, tpu.core_type = #tpu.core_type<tc>, window_params = [{pipeline_mode = #tpu.pipeline_mode<synchronous>, transform_indices = @transform_0, window_bounds = array<i64: 2, 256>}, {transform_indices = @transform_1, window_bounds = array<i64: 128>}, {transform_indices = @transform_2, window_bounds = array<i64: 32>}, {transform_indices = @transform_3, window_bounds = array<i64: 1, 256, 512>}, {pipeline_mode = #tpu.pipeline_mode<synchronous>, transform_indices = @transform_4, window_bounds = array<i64: 1, 512>}, {pipeline_mode = #tpu.pipeline_mode<synchronous>, transform_indices = @transform_5, window_bounds = array<i64: 1, 512>}, {pipeline_mode = #tpu.pipeline_mode<synchronous>, transform_indices = @transform_6, window_bounds = array<i64: 1, 1>}, {pipeline_mode = #tpu.pipeline_mode<synchronous>, transform_indices = @transform_7, window_bounds = array<i64: 2, 1>}]} {
    %c0_i32 = arith.constant 0 : i32
    %0 = arith.cmpi eq, %arg0, %c0_i32 : i32
    %1 = arith.extui %0 : i1 to i32
    %c0_i32_0 = arith.constant 0 : i32
    %2 = arith.cmpi ne, %1, %c0_i32_0 : i32
    scf.if %2 {
      %cst_66 = arith.constant 0.000000e+00 : f32
      %171 = vector.broadcast %cst_66 : f32 to vector<2x512xf32>
      %c0_67 = arith.constant 0 : index
      %c0_68 = arith.constant 0 : index
      %172 = vector.load %arg9[%c0_67, %c0_68] : memref<2x512xf32, #tpu.memory_space<vmem>>, vector<2x512xf32>
      tpu.vector_store %arg9[%c0_67, %c0_68], %171 {strides = array<i32>} : memref<2x512xf32, #tpu.memory_space<vmem>>, vector<2x512xf32>,
    } else {
    }
    %c4_i32 = arith.constant 4 : i32
    %3 = arith.muli %arg0, %c4_i32 : i32
    %c0_i32_1 = arith.constant 0 : i32
    %4 = arith.addi %3, %c0_i32_1 : i32
    %c4_i32_2 = arith.constant 4 : i32
    %5 = arith.muli %4, %c4_i32_2 : i32
    %c0_i32_3 = arith.constant 0 : i32
    %6 = arith.addi %5, %c0_i32_3 : i32
    %7 = arith.index_cast %6 : i32 to index
    %8 = memref.load %arg2[%7] : memref<128xf32, #tpu.memory_space<smem>>
    %c0_i32_4 = arith.constant 0 : i32
    %9 = arith.addi %3, %c0_i32_4 : i32
    %c4_i32_5 = arith.constant 4 : i32
    %10 = arith.muli %9, %c4_i32_5 : i32
    %c1_i32 = arith.constant 1 : i32
    %11 = arith.addi %10, %c1_i32 : i32
    %12 = arith.index_cast %11 : i32 to index
    %13 = memref.load %arg2[%12] : memref<128xf32, #tpu.memory_space<smem>>
    %c0_i32_6 = arith.constant 0 : i32
    %14 = arith.addi %3, %c0_i32_6 : i32
    %c4_i32_7 = arith.constant 4 : i32
    %15 = arith.muli %14, %c4_i32_7 : i32
    %c2_i32 = arith.constant 2 : i32
    %16 = arith.addi %15, %c2_i32 : i32
    %17 = arith.index_cast %16 : i32 to index
    %18 = memref.load %arg2[%17] : memref<128xf32, #tpu.memory_space<smem>>
    %c0_i32_8 = arith.constant 0 : i32
    %19 = arith.addi %3, %c0_i32_8 : i32
    %c4_i32_9 = arith.constant 4 : i32
    %20 = arith.muli %19, %c4_i32_9 : i32
    %c3_i32 = arith.constant 3 : i32
    %21 = arith.addi %20, %c3_i32 : i32
    %22 = arith.index_cast %21 : i32 to index
    %23 = memref.load %arg2[%22] : memref<128xf32, #tpu.memory_space<smem>>
    %c1_i32_10 = arith.constant 1 : i32
    %24 = arith.addi %3, %c1_i32_10 : i32
    %c4_i32_11 = arith.constant 4 : i32
    %25 = arith.muli %24, %c4_i32_11 : i32
    %c0_i32_12 = arith.constant 0 : i32
    %26 = arith.addi %25, %c0_i32_12 : i32
    %27 = arith.index_cast %26 : i32 to index
    %28 = memref.load %arg2[%27] : memref<128xf32, #tpu.memory_space<smem>>
    %c1_i32_13 = arith.constant 1 : i32
    %29 = arith.addi %3, %c1_i32_13 : i32
    %c4_i32_14 = arith.constant 4 : i32
    %30 = arith.muli %29, %c4_i32_14 : i32
    %c1_i32_15 = arith.constant 1 : i32
    %31 = arith.addi %30, %c1_i32_15 : i32
    %32 = arith.index_cast %31 : i32 to index
    %33 = memref.load %arg2[%32] : memref<128xf32, #tpu.memory_space<smem>>
    %c1_i32_16 = arith.constant 1 : i32
    %34 = arith.addi %3, %c1_i32_16 : i32
    %c4_i32_17 = arith.constant 4 : i32
    %35 = arith.muli %34, %c4_i32_17 : i32
    %c2_i32_18 = arith.constant 2 : i32
    %36 = arith.addi %35, %c2_i32_18 : i32
    %37 = arith.index_cast %36 : i32 to index
    %38 = memref.load %arg2[%37] : memref<128xf32, #tpu.memory_space<smem>>
    %c1_i32_19 = arith.constant 1 : i32
    %39 = arith.addi %3, %c1_i32_19 : i32
    %c4_i32_20 = arith.constant 4 : i32
    %40 = arith.muli %39, %c4_i32_20 : i32
    %c3_i32_21 = arith.constant 3 : i32
    %41 = arith.addi %40, %c3_i32_21 : i32
    %42 = arith.index_cast %41 : i32 to index
    %43 = memref.load %arg2[%42] : memref<128xf32, #tpu.memory_space<smem>>
    %c2_i32_22 = arith.constant 2 : i32
    %44 = arith.addi %3, %c2_i32_22 : i32
    %c4_i32_23 = arith.constant 4 : i32
    %45 = arith.muli %44, %c4_i32_23 : i32
    %c0_i32_24 = arith.constant 0 : i32
    %46 = arith.addi %45, %c0_i32_24 : i32
    %47 = arith.index_cast %46 : i32 to index
    %48 = memref.load %arg2[%47] : memref<128xf32, #tpu.memory_space<smem>>
    %c2_i32_25 = arith.constant 2 : i32
    %49 = arith.addi %3, %c2_i32_25 : i32
    %c4_i32_26 = arith.constant 4 : i32
    %50 = arith.muli %49, %c4_i32_26 : i32
    %c1_i32_27 = arith.constant 1 : i32
    %51 = arith.addi %50, %c1_i32_27 : i32
    %52 = arith.index_cast %51 : i32 to index
    %53 = memref.load %arg2[%52] : memref<128xf32, #tpu.memory_space<smem>>
    %c2_i32_28 = arith.constant 2 : i32
    %54 = arith.addi %3, %c2_i32_28 : i32
    %c4_i32_29 = arith.constant 4 : i32
    %55 = arith.muli %54, %c4_i32_29 : i32
    %c2_i32_30 = arith.constant 2 : i32
    %56 = arith.addi %55, %c2_i32_30 : i32
    %57 = arith.index_cast %56 : i32 to index
    %58 = memref.load %arg2[%57] : memref<128xf32, #tpu.memory_space<smem>>
    %c2_i32_31 = arith.constant 2 : i32
    %59 = arith.addi %3, %c2_i32_31 : i32
    %c4_i32_32 = arith.constant 4 : i32
    %60 = arith.muli %59, %c4_i32_32 : i32
    %c3_i32_33 = arith.constant 3 : i32
    %61 = arith.addi %60, %c3_i32_33 : i32
    %62 = arith.index_cast %61 : i32 to index
    %63 = memref.load %arg2[%62] : memref<128xf32, #tpu.memory_space<smem>>
    %c3_i32_34 = arith.constant 3 : i32
    %64 = arith.addi %3, %c3_i32_34 : i32
    %c4_i32_35 = arith.constant 4 : i32
    %65 = arith.muli %64, %c4_i32_35 : i32
    %c0_i32_36 = arith.constant 0 : i32
    %66 = arith.addi %65, %c0_i32_36 : i32
    %67 = arith.index_cast %66 : i32 to index
    %68 = memref.load %arg2[%67] : memref<128xf32, #tpu.memory_space<smem>>
    %c3_i32_37 = arith.constant 3 : i32
    %69 = arith.addi %3, %c3_i32_37 : i32
    %c4_i32_38 = arith.constant 4 : i32
    %70 = arith.muli %69, %c4_i32_38 : i32
    %c1_i32_39 = arith.constant 1 : i32
    %71 = arith.addi %70, %c1_i32_39 : i32
    %72 = arith.index_cast %71 : i32 to index
    %73 = memref.load %arg2[%72] : memref<128xf32, #tpu.memory_space<smem>>
    %c3_i32_40 = arith.constant 3 : i32
    %74 = arith.addi %3, %c3_i32_40 : i32
    %c4_i32_41 = arith.constant 4 : i32
    %75 = arith.muli %74, %c4_i32_41 : i32
    %c2_i32_42 = arith.constant 2 : i32
    %76 = arith.addi %75, %c2_i32_42 : i32
    %77 = arith.index_cast %76 : i32 to index
    %78 = memref.load %arg2[%77] : memref<128xf32, #tpu.memory_space<smem>>
    %c3_i32_43 = arith.constant 3 : i32
    %79 = arith.addi %3, %c3_i32_43 : i32
    %c4_i32_44 = arith.constant 4 : i32
    %80 = arith.muli %79, %c4_i32_44 : i32
    %c3_i32_45 = arith.constant 3 : i32
    %81 = arith.addi %80, %c3_i32_45 : i32
    %82 = arith.index_cast %81 : i32 to index
    %83 = memref.load %arg2[%82] : memref<128xf32, #tpu.memory_space<smem>>
    %c0_i32_46 = arith.constant 0 : i32
    %84 = arith.addi %3, %c0_i32_46 : i32
    %85 = arith.index_cast %84 : i32 to index
    %86 = memref.load %arg3[%85] : memref<32xf32, #tpu.memory_space<smem>>
    %c1_i32_47 = arith.constant 1 : i32
    %87 = arith.addi %3, %c1_i32_47 : i32
    %88 = arith.index_cast %87 : i32 to index
    %89 = memref.load %arg3[%88] : memref<32xf32, #tpu.memory_space<smem>>
    %c2_i32_48 = arith.constant 2 : i32
    %90 = arith.addi %3, %c2_i32_48 : i32
    %91 = arith.index_cast %90 : i32 to index
    %92 = memref.load %arg3[%91] : memref<32xf32, #tpu.memory_space<smem>>
    %c3_i32_49 = arith.constant 3 : i32
    %93 = arith.addi %3, %c3_i32_49 : i32
    %94 = arith.index_cast %93 : i32 to index
    %95 = memref.load %arg3[%94] : memref<32xf32, #tpu.memory_space<smem>>
    %c0 = arith.constant 0 : index
    %c0_50 = arith.constant 0 : index
    %96 = vector.load %arg1[%c0, %c0_50] : memref<2x256xf32, #tpu.memory_space<vmem>>, vector<2x64xf32>
    %c0_51 = arith.constant 0 : index
    %c64 = arith.constant 64 : index
    %97 = vector.load %arg1[%c0_51, %c64] : memref<2x256xf32, #tpu.memory_space<vmem>>, vector<2x64xf32>
    %c0_52 = arith.constant 0 : index
    %c128 = arith.constant 128 : index
    %98 = vector.load %arg1[%c0_52, %c128] : memref<2x256xf32, #tpu.memory_space<vmem>>, vector<2x64xf32>
    %c0_53 = arith.constant 0 : index
    %c192 = arith.constant 192 : index
    %99 = vector.load %arg1[%c0_53, %c192] : memref<2x256xf32, #tpu.memory_space<vmem>>, vector<2x64xf32>
    %100 = vector.broadcast %8 : f32 to vector<2x64xf32>
    %101 = arith.mulf %96, %100 : vector<2x64xf32>
    %102 = vector.broadcast %13 : f32 to vector<2x64xf32>
    %103 = arith.mulf %97, %102 : vector<2x64xf32>
    %104 = arith.addf %101, %103 : vector<2x64xf32>
    %105 = vector.broadcast %18 : f32 to vector<2x64xf32>
    %106 = arith.mulf %98, %105 : vector<2x64xf32>
    %107 = arith.addf %104, %106 : vector<2x64xf32>
    %108 = vector.broadcast %23 : f32 to vector<2x64xf32>
    %109 = arith.mulf %99, %108 : vector<2x64xf32>
    %110 = arith.addf %107, %109 : vector<2x64xf32>
    %111 = vector.broadcast %86 : f32 to vector<2x64xf32>
    %112 = arith.addf %110, %111 : vector<2x64xf32>
    %cst = arith.constant 0.000000e+00 : f32
    %113 = vector.broadcast %cst : f32 to vector<2x64xf32>
    %114 = arith.maximumf %112, %113 : vector<2x64xf32>
    %115 = vector.broadcast %28 : f32 to vector<2x64xf32>
    %116 = arith.mulf %96, %115 : vector<2x64xf32>
    %117 = vector.broadcast %33 : f32 to vector<2x64xf32>
    %118 = arith.mulf %97, %117 : vector<2x64xf32>
    %119 = arith.addf %116, %118 : vector<2x64xf32>
    %120 = vector.broadcast %38 : f32 to vector<2x64xf32>
    %121 = arith.mulf %98, %120 : vector<2x64xf32>
    %122 = arith.addf %119, %121 : vector<2x64xf32>
    %123 = vector.broadcast %43 : f32 to vector<2x64xf32>
    %124 = arith.mulf %99, %123 : vector<2x64xf32>
    %125 = arith.addf %122, %124 : vector<2x64xf32>
    %126 = vector.broadcast %89 : f32 to vector<2x64xf32>
    %127 = arith.addf %125, %126 : vector<2x64xf32>
    %cst_54 = arith.constant 0.000000e+00 : f32
    %128 = vector.broadcast %cst_54 : f32 to vector<2x64xf32>
    %129 = arith.maximumf %127, %128 : vector<2x64xf32>
    %130 = vector.broadcast %48 : f32 to vector<2x64xf32>
    %131 = arith.mulf %96, %130 : vector<2x64xf32>
    %132 = vector.broadcast %53 : f32 to vector<2x64xf32>
    %133 = arith.mulf %97, %132 : vector<2x64xf32>
    %134 = arith.addf %131, %133 : vector<2x64xf32>
    %135 = vector.broadcast %58 : f32 to vector<2x64xf32>
    %136 = arith.mulf %98, %135 : vector<2x64xf32>
    %137 = arith.addf %134, %136 : vector<2x64xf32>
    %138 = vector.broadcast %63 : f32 to vector<2x64xf32>
    %139 = arith.mulf %99, %138 : vector<2x64xf32>
    %140 = arith.addf %137, %139 : vector<2x64xf32>
    %141 = vector.broadcast %92 : f32 to vector<2x64xf32>
    %142 = arith.addf %140, %141 : vector<2x64xf32>
    %cst_55 = arith.constant 0.000000e+00 : f32
    %143 = vector.broadcast %cst_55 : f32 to vector<2x64xf32>
    %144 = arith.maximumf %142, %143 : vector<2x64xf32>
    %145 = vector.broadcast %68 : f32 to vector<2x64xf32>
    %146 = arith.mulf %96, %145 : vector<2x64xf32>
    %147 = vector.broadcast %73 : f32 to vector<2x64xf32>
    %148 = arith.mulf %97, %147 : vector<2x64xf32>
    %149 = arith.addf %146, %148 : vector<2x64xf32>
    %150 = vector.broadcast %78 : f32 to vector<2x64xf32>
    %151 = arith.mulf %98, %150 : vector<2x64xf32>
    %152 = arith.addf %149, %151 : vector<2x64xf32>
    %153 = vector.broadcast %83 : f32 to vector<2x64xf32>
    %154 = arith.mulf %99, %153 : vector<2x64xf32>
    %155 = arith.addf %152, %154 : vector<2x64xf32>
    %156 = vector.broadcast %95 : f32 to vector<2x64xf32>
    %157 = arith.addf %155, %156 : vector<2x64xf32>
    %cst_56 = arith.constant 0.000000e+00 : f32
    %158 = vector.broadcast %cst_56 : f32 to vector<2x64xf32>
    %159 = arith.maximumf %157, %158 : vector<2x64xf32>
    %160 = tpu.concatenate %114, %129, %144, %159 in 1 : vector<2x64xf32>, vector<2x64xf32>, vector<2x64xf32>, vector<2x64xf32> -> vector<2x256xf32>
    %c0_57 = arith.constant 0 : index
    %c0_58 = arith.constant 0 : index
    %161 = vector.load %arg9[%c0_57, %c0_58] : memref<2x512xf32, #tpu.memory_space<vmem>>, vector<2x512xf32>
    %162 = arith.truncf %160 : vector<2x256xf32> to vector<2x256xbf16>
    %c0_59 = arith.constant 0 : index
    %c0_60 = arith.constant 0 : index
    %c0_61 = arith.constant 0 : index
    %163 = vector.load %arg4[%c0_59, %c0_60, %c0_61] : memref<1x256x512xbf16, #tpu.memory_space<vmem>>, vector<1x256x512xbf16>
    %164 = vector.shape_cast %163 : vector<1x256x512xbf16> to vector<256x512xbf16>
    %cst_62 = arith.constant dense<0.000000e+00> : vector<2x512xf32>
    %165 = tpu.matmul %162, %164, %cst_62 {dimension_numbers = #tpu.dot_dimension_numbers<[1], [0], [0], [1], [0, 0, 1, 1], [], []>} : vector<2x256xbf16>, vector<256x512xbf16>, vector<2x512xf32> -> vector<2x512xf32>
    %166 = arith.addf %161, %165 : vector<2x512xf32>
    %c0_63 = arith.constant 0 : index
    %c0_64 = arith.constant 0 : index
    %167 = vector.load %arg9[%c0_63, %c0_64] : memref<2x512xf32, #tpu.memory_space<vmem>>, vector<2x512xf32>
    tpu.vector_store %arg9[%c0_63, %c0_64], %166 {strides = array<i32>} : memref<2x512xf32, #tpu.memory_space<vmem>>, vector<2x512xf32>,
    %c7_i32 = arith.constant 7 : i32
    %168 = arith.cmpi eq, %arg0, %c7_i32 : i32
    %169 = arith.extui %168 : i1 to i32
    %c0_i32_65 = arith.constant 0 : i32
    %170 = arith.cmpi ne, %169, %c0_i32_65 : i32
    scf.if %170 {
      %c0_66 = arith.constant 0 : index
      %c0_67 = arith.constant 0 : index
      %171 = vector.load %arg9[%c0_66, %c0_67] : memref<2x512xf32, #tpu.memory_space<vmem>>, vector<2x512xf32>
      %c0_68 = arith.constant 0 : index
      %c0_69 = arith.constant 0 : index
      %172 = vector.load %arg5[%c0_68, %c0_69] : memref<1x512xf32, #tpu.memory_space<vmem>>, vector<1x512xf32>
      %173 = vector.broadcast %172 : vector<1x512xf32> to vector<2x512xf32>
      %174 = arith.addf %171, %173 : vector<2x512xf32>
      %cst_70 = arith.constant 0.000000e+00 : f32
      %175 = vector.broadcast %cst_70 : f32 to vector<2x512xf32>
      %176 = arith.maximumf %174, %175 : vector<2x512xf32>
      %c0_71 = arith.constant 0 : index
      %c0_72 = arith.constant 0 : index
      %177 = vector.load %arg6[%c0_71, %c0_72] : memref<1x512xf32, #tpu.memory_space<vmem>>, vector<1x512xf32>
      %178 = vector.broadcast %177 : vector<1x512xf32> to vector<2x512xf32>
      %179 = arith.mulf %176, %178 : vector<2x512xf32>
      %cst_73 = arith.constant dense<0.000000e+00> : vector<2xf32>
      %180 = vector.multi_reduction <add>, %179, %cst_73 [1] : vector<2x512xf32> to vector<2xf32>
      %181 = vector.shape_cast %180 : vector<2xf32> to vector<2x1xf32>
      %c0_74 = arith.constant 0 : index
      %c0_75 = arith.constant 0 : index
      %182 = vector.load %arg7[%c0_74, %c0_75] : memref<1x1xf32, #tpu.memory_space<vmem>>, vector<1x1xf32>
      %183 = vector.broadcast %182 : vector<1x1xf32> to vector<2x1xf32>
      %184 = arith.addf %181, %183 : vector<2x1xf32>
      %185 = math.tanh %184 : vector<2x1xf32>
      %c0_76 = arith.constant 0 : index
      %c0_77 = arith.constant 0 : index
      %186 = vector.load %arg8[%c0_76, %c0_77] : memref<2x1xf32, #tpu.memory_space<vmem>>, vector<2x1xf32>
      tpu.vector_store %arg8[%c0_76, %c0_77], %185 {strides = array<i32>} : memref<2x1xf32, #tpu.memory_space<vmem>>, vector<2x1xf32>,
    } else {
    }
    return
  }
  func.func @transform_0(%arg0: i32) -> (i32, i32) {
    %c0_i32 = arith.constant 0 : i32
    %c0_i32_0 = arith.constant 0 : i32
    %c0_i32_1 = arith.constant 0 : i32
    return %c0_i32, %c0_i32_0 : i32, i32
  }
  func.func @transform_1(%arg0: i32) -> i32 {
    %c0_i32 = arith.constant 0 : i32
    %c0_i32_0 = arith.constant 0 : i32
    return %c0_i32 : i32
  }
  func.func @transform_2(%arg0: i32) -> i32 {
    %c0_i32 = arith.constant 0 : i32
    %c0_i32_0 = arith.constant 0 : i32
    return %c0_i32 : i32
  }
  func.func @transform_3(%arg0: i32) -> (i32, i32, i32) {
    %c0_i32 = arith.constant 0 : i32
    %c0_i32_0 = arith.constant 0 : i32
    %c0_i32_1 = arith.constant 0 : i32
    return %arg0, %c0_i32, %c0_i32_0 : i32, i32, i32
  }
  func.func @transform_4(%arg0: i32) -> (i32, i32) {
    %c0_i32 = arith.constant 0 : i32
    %c0_i32_0 = arith.constant 0 : i32
    %c0_i32_1 = arith.constant 0 : i32
    return %c0_i32, %c0_i32_0 : i32, i32
  }
  func.func @transform_5(%arg0: i32) -> (i32, i32) {
    %c0_i32 = arith.constant 0 : i32
    %c0_i32_0 = arith.constant 0 : i32
    %c0_i32_1 = arith.constant 0 : i32
    return %c0_i32, %c0_i32_0 : i32, i32
  }
  func.func @transform_6(%arg0: i32) -> (i32, i32) {
    %c0_i32 = arith.constant 0 : i32
    %c0_i32_0 = arith.constant 0 : i32
    %c0_i32_1 = arith.constant 0 : i32
    return %c0_i32, %c0_i32_0 : i32, i32
  }
  func.func @transform_7(%arg0: i32) -> (i32, i32) {
    %c0_i32 = arith.constant 0 : i32
    %c0_i32_0 = arith.constant 0 : i32
    %c0_i32_1 = arith.constant 0 : i32
    return %c0_i32, %c0_i32_0 : i32, i32
  }
}

</mosaic_0001>

<llo_original>
// kernel: value_head_forward.1
$region0: #{value_head_forward.1}
  #allocation0 [shape = 'u32[]', space=smem, size = 0x4, offset = 0x4, fixed_abs, tag = 'smem constant byte address 0x4 - core index']
  #allocation1 [shape = 'u32[144,128]{1,0:T(1,128)}', space=vmem, size = 0x12000, scoped, tag = 'internal scratch']
  #allocation2 [shape = 'f32[2,512]{1,0:T(2,128)}', space=vmem, size = 0x1000, scoped, tag = 'scratch operand']
  #allocation3 [shape = 'f32[1,1]{1,0:T(1,128)S(1)}', space=vmem, size = 0x200, scoped, tag = 'scoped memory for value_head_forward.1']
  %s0 = inlined_call_operand.vmem [shape: f32[2,256], index: 0, kind: input, shape index: {}]
  %s1 = inlined_call_operand.hbm [shape: f32[128], index: 1, kind: input, shape index: {}]
  %s2 = inlined_call_operand.hbm [shape: f32[32], index: 2, kind: input, shape index: {}]
  %s3 = inlined_call_operand.hbm [shape: bf16[8,256,512], index: 3, kind: input, shape index: {}]
  %s4 = inlined_call_operand.hbm [shape: f32[1,512], index: 4, kind: input, shape index: {}]
  %s5 = inlined_call_operand.hbm [shape: f32[1,512], index: 5, kind: input, shape index: {}]
  %s6 = inlined_call_operand.<no memory space> [shape: f32[1,1], index: 6, kind: input, shape index: {}]
  %s7 = inlined_call_operand.vmem [shape: f32[2,1], index: 7, kind: output, shape index: {}]
  %s8 = sld [smem:[#allocation0]]
  $region89: #{value_head_forward.1} parent=0
    _
  %s10 = ssub.s32 1, %s8
  %s11 = scalar_select 0, %s10, %s8
  %v12 = vstv %s6
  %13 = vst [vmem:[#allocation3] sm:$0x1] %v12
  $region1: #{value_head_forward.1} parent=0
    #allocation4 [shape = 'u8[512]{0}', space=smem, size = 0x200, scoped, tag = 'input window, operand 1, single buffered']
    #allocation5 [shape = 's32[2]{0}', space=sflag, size = 0x8, scoped, tag = 'scoped memory for value_head_forward.1']
    #allocation6 [shape = 's32[2]{0}', space=sflag, size = 0x8, scoped, tag = 'scoped memory for value_head_forward.1']
    #allocation7 [shape = 'u8[512]{0}', space=smem, size = 0x200, scoped, tag = 'input window, operand 2, single buffered']
    #allocation8 [shape = 's32[1]{0}', space=sflag, size = 0x4, scoped, tag = 'scoped memory for value_head_forward.1']
    #allocation9 [shape = 'u8[524288]{0}', space=vmem, size = 0x80000, scoped, tag = 'input window, operand 3']
    #allocation10 [shape = 'u8[2048]{0}', space=vmem, size = 0x800, scoped, tag = 'input window, operand 4, single buffered']
    #allocation11 [shape = 's32[1]{0}', space=sflag, size = 0x4, scoped, tag = 'scoped memory for value_head_forward.1']
    #allocation12 [shape = 'u8[2048]{0}', space=vmem, size = 0x800, scoped, tag = 'input window, operand 5, single buffered']
    %14 = vsyncpa [#allocation6], 0
    %15 = vsyncpa [#allocation8], 0
    %16 = vsyncpa [#allocation5], 0
    %s17 = scalar_lea.sflag [#allocation5], 1
    %18 = vsyncpa %s17, 0
    %19 = vsyncpa [#allocation11], 0
    loop: start=0, step=1, limit=10
    $region2: #{value_head_forward.1} parent=1 // loop_pre_header
      _
    $region3: #{value_head_forward.1} parent=1 // loop_header
      %s21 = sphi 0, %s25
      %p22 = scmp.ge.s32.totalorder %s21, 10
      %s29 = sphi 0, %s29
      %s31 = sphi 0, %s29
      %s32 = sphi 0, %s31
      %s46 = sphi 0, %s32
      %s50 = sphi 0, %s50
      %s52 = sphi 0, %s50
      %s53 = sphi 0, %s52
      %s67 = sphi 0, %s53
      %s71 = sphi 0, %s71
      %s73 = sphi 0, %s71
      %s74 = sphi 0, %s73
      %s88 = sphi 0, %s74
      %s94 = sphi 0, %s96
      %s97 = sphi 0, %s94
      %s98 = sphi 0, %s97
      %s114 = sphi 0, %s98
      %s118 = sphi 0, %s118
      %s120 = sphi 0, %s118
      %s121 = sphi 0, %s120
      %s135 = sphi 0, %s121
      %s139 = sphi 0, %s139
      %s141 = sphi 0, %s139
      %s142 = sphi 0, %s141
      %s156 = sphi 0, %s142
      %s160 = sphi 0, %s160
      %s162 = sphi 0, %s160
      %s163 = sphi 0, %s162
      %s177 = sphi 0, %s163
      %s181 = sphi 0, %s181
      %s183 = sphi 0, %s181
      %s184 = sphi 0, %s183
      %s198 = sphi 0, %s184
    $region4: #{value_head_forward.1} parent=1 // loop_header_branch
      %24 = sbr.rel (%p22) target = $region8
    $region5: #{value_head_forward.1} parent=1 // loop_body
      %s26 = ssub.s32 %s21, 1
      %s27 = ssub.s32 %s21, 2
      %s28 = sadd.s32 %s21, 1
      %s30 = sadd.s32 %s29, 1
      %p33 = scmp.eq.s32.totalorder %s21, 7
      %p34 = scmp.ne.s32.totalorder %s29, %s31
      %p35 = scmp.eq.s32.totalorder %s21, 0
      %p36 = por %p34, %p35
      %p37 = scmp.ne.s32.totalorder %s29, %s31
      %p38 = scmp.eq.s32.totalorder %s26, 7
      %p39 = por %p37, %p38
      %p40 = scmp.ne.s32.totalorder %s31, %s32
      %p41 = scmp.eq.s32.totalorder %s26, 0
      %p42 = por %p40, %p41
      %p43 = scmp.ne.s32.totalorder %s31, %s32
      %p44 = scmp.eq.s32.totalorder %s27, 7
      %p45 = por %p43, %p44
      %p47 = scmp.ne.s32.totalorder %s32, %s46
      %p48 = scmp.eq.s32.totalorder %s27, 0
      %p49 = por %p47, %p48
      %s51 = sadd.s32 %s50, 1
      %p54 = scmp.eq.s32.totalorder %s21, 7
      %p55 = scmp.ne.s32.totalorder %s50, %s52
      %p56 = scmp.eq.s32.totalorder %s21, 0
      %p57 = por %p55, %p56
      %p58 = scmp.ne.s32.totalorder %s50, %s52
      %p59 = scmp.eq.s32.totalorder %s26, 7
      %p60 = por %p58, %p59
      %p61 = scmp.ne.s32.totalorder %s52, %s53
      %p62 = scmp.eq.s32.totalorder %s26, 0
      %p63 = por %p61, %p62
      %p64 = scmp.ne.s32.totalorder %s52, %s53
      %p65 = scmp.eq.s32.totalorder %s27, 7
      %p66 = por %p64, %p65
      %p68 = scmp.ne.s32.totalorder %s53, %s67
      %p69 = scmp.eq.s32.totalorder %s27, 0
      %p70 = por %p68, %p69
      %s72 = sadd.s32 %s71, 1
      %p75 = scmp.eq.s32.totalorder %s21, 7
      %p76 = scmp.ne.s32.totalorder %s71, %s73
      %p77 = scmp.eq.s32.totalorder %s21, 0
      %p78 = por %p76, %p77
      %p79 = scmp.ne.s32.totalorder %s71, %s73
      %p80 = scmp.eq.s32.totalorder %s26, 7
      %p81 = por %p79, %p80
      %p82 = scmp.ne.s32.totalorder %s73, %s74
      %p83 = scmp.eq.s32.totalorder %s26, 0
      %p84 = por %p82, %p83
      %p85 = scmp.ne.s32.totalorder %s73, %s74
      %p86 = scmp.eq.s32.totalorder %s27, 7
      %p87 = por %p85, %p86
      %p89 = scmp.ne.s32.totalorder %s74, %s88
      %p90 = scmp.eq.s32.totalorder %s27, 0
      %p91 = por %p89, %p90
      %s92 = ssub.s32 %s21, %s28
      %p93 = scmp.eq.s32.totalorder %s92, 0
      %s95 = sadd.s32 %s94, 1
      %s96 = scalar_select %p93, %s94, %s95
      %p99 = pneg %p93
      %p100 = scmp.eq.s32.totalorder %s21, 7
      %p101 = por %p99, %p100
      %p102 = scmp.ne.s32.totalorder %s94, %s97
      %p103 = scmp.eq.s32.totalorder %s21, 0
      %p104 = por %p102, %p103
      %p105 = scmp.ne.s32.totalorder %s94, %s97
      %p106 = scmp.eq.s32.totalorder %s26, 7
      %p107 = por %p105, %p106
      %p108 = scmp.ne.s32.totalorder %s97, %s98
      %p109 = scmp.eq.s32.totalorder %s26, 0
      %p110 = por %p108, %p109
      %p111 = scmp.ne.s32.totalorder %s97, %s98
      %p112 = scmp.eq.s32.totalorder %s27, 7
      %p113 = por %p111, %p112
      %p115 = scmp.ne.s32.totalorder %s98, %s114
      %p116 = scmp.eq.s32.totalorder %s27, 0
      %p117 = por %p115, %p116
      %s119 = sadd.s32 %s118, 1
      %p122 = scmp.eq.s32.totalorder %s21, 7
      %p123 = scmp.ne.s32.totalorder %s118, %s120
      %p124 = scmp.eq.s32.totalorder %s21, 0
      %p125 = por %p123, %p124
      %p126 = scmp.ne.s32.totalorder %s118, %s120
      %p127 = scmp.eq.s32.totalorder %s26, 7
      %p128 = por %p126, %p127
      %p129 = scmp.ne.s32.totalorder %s120, %s121
      %p130 = scmp.eq.s32.totalorder %s26, 0
      %p131 = por %p129, %p130
      %p132 = scmp.ne.s32.totalorder %s120, %s121
      %p133 = scmp.eq.s32.totalorder %s27, 7
      %p134 = por %p132, %p133
      %p136 = scmp.ne.s32.totalorder %s121, %s135
      %p137 = scmp.eq.s32.totalorder %s27, 0
      %p138 = por %p136, %p137
      %s140 = sadd.s32 %s139, 1
      %p143 = scmp.eq.s32.totalorder %s21, 7
      %p144 = scmp.ne.s32.totalorder %s139, %s141
      %p145 = scmp.eq.s32.totalorder %s21, 0
      %p146 = por %p144, %p145
      %p147 = scmp.ne.s32.totalorder %s139, %s141
      %p148 = scmp.eq.s32.totalorder %s26, 7
      %p149 = por %p147, %p148
      %p150 = scmp.ne.s32.totalorder %s141, %s142
      %p151 = scmp.eq.s32.totalorder %s26, 0
      %p152 = por %p150, %p151
      %p153 = scmp.ne.s32.totalorder %s141, %s142
      %p154 = scmp.eq.s32.totalorder %s27, 7
      %p155 = por %p153, %p154
      %p157 = scmp.ne.s32.totalorder %s142, %s156
      %p158 = scmp.eq.s32.totalorder %s27, 0
      %p159 = por %p157, %p158
      %s161 = sadd.s32 %s160, 1
      %p164 = scmp.eq.s32.totalorder %s21, 7
      %p165 = scmp.ne.s32.totalorder %s160, %s162
      %p166 = scmp.eq.s32.totalorder %s21, 0
      %p167 = por %p165, %p166
      %p168 = scmp.ne.s32.totalorder %s160, %s162
      %p169 = scmp.eq.s32.totalorder %s26, 7
      %p170 = por %p168, %p169
      %p171 = scmp.ne.s32.totalorder %s162, %s163
      %p172 = scmp.eq.s32.totalorder %s26, 0
      %p173 = por %p171, %p172
      %p174 = scmp.ne.s32.totalorder %s162, %s163
      %p175 = scmp.eq.s32.totalorder %s27, 7
      %p176 = por %p174, %p175
      %p178 = scmp.ne.s32.totalorder %s163, %s177
      %p179 = scmp.eq.s32.totalorder %s27, 0
      %p180 = por %p178, %p179
      %s182 = sadd.s32 %s181, 1
      %p185 = scmp.eq.s32.totalorder %s21, 7
      %p186 = scmp.ne.s32.totalorder %s181, %s183
      %p187 = scmp.eq.s32.totalorder %s21, 0
      %p188 = por %p186, %p187
      %p189 = scmp.ne.s32.totalorder %s181, %s183
      %p190 = scmp.eq.s32.totalorder %s26, 7
      %p191 = por %p189, %p190
      %p192 = scmp.ne.s32.totalorder %s183, %s184
      %p193 = scmp.eq.s32.totalorder %s26, 0
      %p194 = por %p192, %p193
      %p195 = scmp.ne.s32.totalorder %s183, %s184
      %p196 = scmp.eq.s32.totalorder %s27, 7
      %p197 = por %p195, %p196
      %p199 = scmp.ne.s32.totalorder %s184, %s198
      %p200 = scmp.eq.s32.totalorder %s27, 0
      %p201 = por %p199, %p200
      %p202 = scmp.le.s32.totalorder 1, %s21
      %p203 = scmp.lt.s32.totalorder %s21, 9
      %p204 = pnand %p202, %p203
      %p205 = pneg %p204
      // Predicated region
      $region9: #{value_head_forward.1} parent=5 // pred_check
        _
      $region10: #{value_head_forward.1} parent=5 // pred_check_branch
        %207 = sbr.rel (%p204) target = $region12
      $region11: #{value_head_forward.1} parent=5 // pred_region
        %s208 = ssub.s32 %s21, 1
        // Predicated region
        $region13: #{value_head_forward.1} parent=11 // pred_check
          %p209 = pneg %p42
        $region14: #{value_head_forward.1} parent=11 // pred_check_branch
          %211 = sbr.rel (%p209) target = $region16
        $region15: #{value_head_forward.1} parent=11 // pred_region
          _
        $region16: #{value_head_forward.1} parent=11 // pred_fallthru
          _
        // Predicated region
        $region17: #{value_head_forward.1} parent=11 // pred_check
          %p212 = pneg %p63
        $region18: #{value_head_forward.1} parent=11 // pred_check_branch
          %214 = sbr.rel (%p212) target = $region20
        $region19: #{value_head_forward.1} parent=11 // pred_region
          %s216 = ssub.s32 16, 16
          %217 = vsyncadd [#allocation6], %s216
          %220 = dma.hbm_to_smem %s1, 16, [#allocation4], [#allocation6]
        $region20: #{value_head_forward.1} parent=11 // pred_fallthru
          _
        // Predicated region
        $region21: #{value_head_forward.1} parent=11 // pred_check
          %p221 = pneg %p84
        $region22: #{value_head_forward.1} parent=11 // pred_check_branch
          %223 = sbr.rel (%p221) target = $region24
        $region23: #{value_head_forward.1} parent=11 // pred_region
          %s225 = ssub.s32 16, 16
          %226 = vsyncadd [#allocation8], %s225
          %229 = dma.hbm_to_smem %s2, 16, [#allocation7], [#allocation8]
        $region24: #{value_head_forward.1} parent=11 // pred_fallthru
          _
        // Predicated region
        $region25: #{value_head_forward.1} parent=11 // pred_check
          %p230 = pneg %p131
        $region26: #{value_head_forward.1} parent=11 // pred_check_branch
          %232 = sbr.rel (%p230) target = $region28
        $region27: #{value_head_forward.1} parent=11 // pred_region
          %s234 = ssub.s32 64, 64
          %235 = vsyncadd [#allocation11], %s234
          %s237 = sshll.u32 [#allocation10], 4
          %s238 = int_to_ptr.vmem [resolvable:$true] %s237
          %240 = dma.hbm_to_vmem [thread:$0]  %s4, 64, %s238, [#allocation11]
        $region28: #{value_head_forward.1} parent=11 // pred_fallthru
          _
        // Predicated region
        $region29: #{value_head_forward.1} parent=11 // pred_check
          %p241 = pneg %p152
        $region30: #{value_head_forward.1} parent=11 // pred_check_branch
          %243 = sbr.rel (%p241) target = $region32
        $region31: #{value_head_forward.1} parent=11 // pred_region
          %s245 = ssub.s32 64, 64
          %246 = vsyncadd [#allocation11], %s245
          %s248 = sshll.u32 [#allocation12], 4
          %s249 = int_to_ptr.vmem [resolvable:$true] %s248
          %251 = dma.hbm_to_vmem [thread:$0]  %s5, 64, %s249, [#allocation11]
        $region32: #{value_head_forward.1} parent=11 // pred_fallthru
          _
        // Predicated region
        $region33: #{value_head_forward.1} parent=11 // pred_check
          %p252 = pneg %p173
        $region34: #{value_head_forward.1} parent=11 // pred_check_branch
          %254 = sbr.rel (%p252) target = $region36
        $region35: #{value_head_forward.1} parent=11 // pred_region
          _
        $region36: #{value_head_forward.1} parent=11 // pred_fallthru
          _
      $region12: #{value_head_forward.1} parent=5 // pred_fallthru
        _
      %p255 = scmp.lt.s32.totalorder %s21, 8
      // Predicated region
      $region37: #{value_head_forward.1} parent=5 // pred_check
        %p256 = pneg %p255
      $region38: #{value_head_forward.1} parent=5 // pred_check_branch
        %258 = sbr.rel (%p256) target = $region40
      $region39: #{value_head_forward.1} parent=5 // pred_region
        // Predicated region
        $region41: #{value_head_forward.1} parent=39 // pred_check
          %p259 = pneg %p104
        $region42: #{value_head_forward.1} parent=39 // pred_check_branch
          %261 = sbr.rel (%p259) target = $region44
        $region43: #{value_head_forward.1} parent=39 // pred_region
          %s262 = sand.u32 %s94, 1
          %s263 = scalar_lea.sflag [#allocation5], %s262
          %s264 = sand.u32 %s94, 1
          %s265 = smul.addr %s264, 512
          %s266 = scalar_lea.vmem [#allocation9], %s265
          %s268 = ssub.s32 8192, 8192
          %269 = vsyncadd %s263, %s268
          %s270 = smul.addr %s21, 128
          %s271 = smul.addr %s270, 64
          %s272 = scalar_lea.hbm %s3, %s271
          %s273 = sshll.u32 %s266, 4
          %s274 = int_to_ptr.vmem [resolvable:$true] %s273
          %279 = dma.hbm_to_vmem [thread:$0]  %s272, 8192, %s274, %s263, 256, 256, 16
        $region44: #{value_head_forward.1} parent=39 // pred_fallthru
          _
      $region40: #{value_head_forward.1} parent=5 // pred_fallthru
        _
      %p280 = scmp.le.s32.totalorder 1, %s21
      %p281 = scmp.lt.s32.totalorder %s21, 9
      %p282 = pnand %p280, %p281
      %p283 = pneg %p282
      // Predicated region
      $region45: #{value_head_forward.1} parent=5 // pred_check
        _
      $region46: #{value_head_forward.1} parent=5 // pred_check_branch
        %285 = sbr.rel (%p282) target = $region48
      $region47: #{value_head_forward.1} parent=5 // pred_region
        %s286 = ssub.s32 %s21, 1
        // Predicated region
        $region49: #{value_head_forward.1} parent=47 // pred_check
          %p287 = pneg %p63
        $region50: #{value_head_forward.1} parent=47 // pred_check_branch
          %289 = sbr.rel (%p287) target = $region52
        $region51: #{value_head_forward.1} parent=47 // pred_region
          %290 = dma.done [#allocation6], 16
        $region52: #{value_head_forward.1} parent=47 // pred_fallthru
          _
        // Predicated region
        $region53: #{value_head_forward.1} parent=47 // pred_check
          %p291 = pneg %p84
        $region54: #{value_head_forward.1} parent=47 // pred_check_branch
          %293 = sbr.rel (%p291) target = $region56
        $region55: #{value_head_forward.1} parent=47 // pred_region
          %294 = dma.done [#allocation8], 16
        $region56: #{value_head_forward.1} parent=47 // pred_fallthru
          _
        %s295 = sand.u32 %s97, 1
        %s296 = scalar_lea.sflag [#allocation5], %s295
        %s297 = sand.u32 %s97, 1
        %s298 = smul.addr %s297, 512
        %s299 = scalar_lea.vmem [#allocation9], %s298
        // Predicated region
        $region57: #{value_head_forward.1} parent=47 // pred_check
          %p300 = pneg %p110
        $region58: #{value_head_forward.1} parent=47 // pred_check_branch
          %302 = sbr.rel (%p300) target = $region60
        $region59: #{value_head_forward.1} parent=47 // pred_region
          %303 = dma.done %s296, 8192
        $region60: #{value_head_forward.1} parent=47 // pred_fallthru
          _
        // Predicated region
        $region61: #{value_head_forward.1} parent=47 // pred_check
          %p304 = pneg %p131
        $region62: #{value_head_forward.1} parent=47 // pred_check_branch
          %306 = sbr.rel (%p304) target = $region64
        $region63: #{value_head_forward.1} parent=47 // pred_region
          %307 = dma.done [#allocation11], 64
        $region64: #{value_head_forward.1} parent=47 // pred_fallthru
          _
        // Predicated region
        $region65: #{value_head_forward.1} parent=47 // pred_check
          %p308 = pneg %p152
        $region66: #{value_head_forward.1} parent=47 // pred_check_branch
          %310 = sbr.rel (%p308) target = $region68
        $region67: #{value_head_forward.1} parent=47 // pred_region
          %311 = dma.done [#allocation11], 64
        $region68: #{value_head_forward.1} parent=47 // pred_fallthru
          _
        %312 = sfence
        %p313 = pneg %p42
        %p314 = pneg %p39
        %p315 = pneg %p63
        %p316 = pneg %p60
        %p317 = pneg %p84
        %p318 = pneg %p81
        %s319 = sand.u32 %s97, 1
        %s320 = scalar_lea.sflag [#allocation5], %s319
        %s321 = sand.u32 %s97, 1
        %s322 = smul.addr %s321, 512
        %s323 = scalar_lea.vmem [#allocation9], %s322
        %p324 = pneg %p110
        %p325 = pneg %p107
        %p326 = pneg %p131
        %p327 = pneg %p128
        %p328 = pneg %p152
        %p329 = pneg %p149
        %p330 = pneg %p173
        %p331 = pneg %p170
        %p332 = pneg %p194
        %p333 = pneg %p191
        %p334 = scmp.eq.s32.totalorder %s26, 0
        // Predicated region
        $region69: #{value_head_forward.1} parent=47 // pred_check
          %p335 = pneg %p334
        $region70: #{value_head_forward.1} parent=47 // pred_check_branch
          %337 = sbr.rel (%p335) target = $region72
        $region71: #{value_head_forward.1} parent=47 // pred_region
          %338 = vst [vmem:[#allocation2] sm:$0xff] 0.0
        $region72: #{value_head_forward.1} parent=47 // pred_fallthru
          _
        %s339 = smul.u32 %s26, 4
        %s340 = smul.u32 %s26, 16
        %s341 = sld [smem:[#allocation4 + %s340]]
        %s342 = sadd.s32 %s340, 1
        %s343 = sld [smem:[#allocation4 + %s342]]
        %s344 = sadd.s32 %s340, 2
        %s345 = sld [smem:[#allocation4 + %s344]]
        %s346 = sadd.s32 %s340, 3
        %s347 = sld [smem:[#allocation4 + %s346]]
        %s348 = sadd.s32 %s339, 1
        %s349 = smul.u32 %s348, 4
        %s350 = sld [smem:[#allocation4 + %s349]]
        %s351 = sadd.s32 %s349, 1
        %s352 = sld [smem:[#allocation4 + %s351]]
        %s353 = sadd.s32 %s349, 2
        %s354 = sld [smem:[#allocation4 + %s353]]
        %s355 = sadd.s32 %s349, 3
        %s356 = sld [smem:[#allocation4 + %s355]]
        %s357 = sadd.s32 %s339, 2
        %s358 = smul.u32 %s357, 4
        %s359 = sld [smem:[#allocation4 + %s358]]
        %s360 = sadd.s32 %s358, 1
        %s361 = sld [smem:[#allocation4 + %s360]]
        %s362 = sadd.s32 %s358, 2
        %s363 = sld [smem:[#allocation4 + %s362]]
        %s364 = sadd.s32 %s358, 3
        %s365 = sld [smem:[#allocation4 + %s364]]
        %s366 = sadd.s32 %s339, 3
        %s367 = smul.u32 %s366, 4
        %s368 = sld [smem:[#allocation4 + %s367]]
        %s369 = sadd.s32 %s367, 1
        %s370 = sld [smem:[#allocation4 + %s369]]
        %s371 = sadd.s32 %s367, 2
        %s372 = sld [smem:[#allocation4 + %s371]]
        %s373 = sadd.s32 %s367, 3
        %s374 = sld [smem:[#allocation4 + %s373]]
        %s375 = sld [smem:[#allocation7 + %s339]]
        %s376 = sld [smem:[#allocation7 + %s348]]
        %s377 = sld [smem:[#allocation7 + %s357]]
        %s378 = sld [smem:[#allocation7 + %s366]]
        %v379 = vld [vmem:[%s0] sm:$0x3]
        %v380 = vld [vmem:[%s0 + $0x2] sm:$0x3]
        %v381 = vstv %s341
        %v382 = vmul.f32 %v379, %v381
        %v383 = vstv %s343
        %v384 = vmul.f32 %v379, %v383
        %386 = vrot.lane.b32.xlu0 %v384, 64
        %v387 = vpop.permute.xlu0 %386
        %v389 = vadd.f32 %v382, %v387
        %v390 = vstv %s345
        %v391 = vmul.f32 %v380, %v390
        %v392 = vadd.f32 %v389, %v391
        %v393 = vstv %s347
        %v394 = vmul.f32 %v380, %v393
        %396 = vrot.lane.b32.xlu0 %v394, 64
        %v397 = vpop.permute.xlu0 %396
        %v399 = vadd.f32 %v392, %v397
        %v400 = vstv %s375
        %v401 = vadd.f32 %v399, %v400
        %v402 = vmax.f32 %v401, 0.0
        %v403 = vstv %s350
        %v404 = vmul.f32 %v379, %v403
        %v405 = vstv %s352
        %v406 = vmul.f32 %v379, %v405
        %408 = vrot.lane.b32.xlu0 %v406, 64
        %v409 = vpop.permute.xlu0 %408
        %v411 = vadd.f32 %v404, %v409
        %v412 = vstv %s354
        %v413 = vmul.f32 %v380, %v412
        %v414 = vadd.f32 %v411, %v413
        %v415 = vstv %s356
        %v416 = vmul.f32 %v380, %v415
        %418 = vrot.lane.b32.xlu0 %v416, 64
        %v419 = vpop.permute.xlu0 %418
        %v421 = vadd.f32 %v414, %v419
        %v422 = vstv %s376
        %v423 = vadd.f32 %v421, %v422
        %v424 = vmax.f32 %v423, 0.0
        %v425 = vstv %s359
        %v426 = vmul.f32 %v379, %v425
        %v427 = vstv %s361
        %v428 = vmul.f32 %v379, %v427
        %430 = vrot.lane.b32.xlu0 %v428, 64
        %v431 = vpop.permute.xlu0 %430
        %v433 = vadd.f32 %v426, %v431
        %v434 = vstv %s363
        %v435 = vmul.f32 %v380, %v434
        %v436 = vadd.f32 %v433, %v435
        %v437 = vstv %s365
        %v438 = vmul.f32 %v380, %v437
        %440 = vrot.lane.b32.xlu0 %v438, 64
        %v441 = vpop.permute.xlu0 %440
        %v443 = vadd.f32 %v436, %v441
        %v444 = vstv %s377
        %v445 = vadd.f32 %v443, %v444
        %v446 = vmax.f32 %v445, 0.0
        %v447 = vstv %s368
        %v448 = vmul.f32 %v379, %v447
        %v449 = vstv %s370
        %v450 = vmul.f32 %v379, %v449
        %452 = vrot.lane.b32.xlu0 %v450, 64
        %v453 = vpop.permute.xlu0 %452
        %v455 = vadd.f32 %v448, %v453
        %v456 = vstv %s372
        %v457 = vmul.f32 %v380, %v456
        %v458 = vadd.f32 %v455, %v457
        %v459 = vstv %s374
        %v460 = vmul.f32 %v380, %v459
        %462 = vrot.lane.b32.xlu0 %v460, 64
        %v463 = vpop.permute.xlu0 %462
        %v465 = vadd.f32 %v458, %v463
        %v466 = vstv %s378
        %v467 = vadd.f32 %v465, %v466
        %v468 = vmax.f32 %v467, 0.0
        %v471 = vunpack.c.l.s4 1983009808
        %v472 = vunpack.c.0.s8 %v471
        %v473 = vlaneseq
        %v474 = vshrl.u32 %v473, 7
        %v475 = vsub.s32 %v472, %v474
        %v476 = vrot.slane %v424, %v475
        %477 = vrot.lane.b32.xlu0 %v476, 64
        %v478 = vpop.permute.xlu0 %477
        %v482 = vunpack.c.l.s4 1983009808
        %v483 = vunpack.c.0.s8 %v482
        %v484 = vlaneseq
        %v485 = vshrl.u32 %v484, 7
        %v486 = vsub.s32 %v483, %v485
        %v487 = vrot.slane %v468, %v486
        %488 = vrot.lane.b32.xlu0 %v487, 64
        %v489 = vpop.permute.xlu0 %488
        %vm491 = vcmask 523264
        %v492 = vsel %vm491, %v402, %v478
        %v493 = vsel %vm491, %v446, %v489
        %v494 = vld [vmem:[#allocation2] sm:$0xff]
        %v495 = vpack.c.bf16 %v492, %v492
        %v496 = vpack.c.bf16 %v493, %v493
        %v497 = vld [vmem:[%s299] sm:$0xff]
        %v498 = vld [vmem:[%s299 + $0x8] sm:$0xff]
        %v499 = vld [vmem:[%s299 + $0x10] sm:$0xff]
        %v500 = vld [vmem:[%s299 + $0x18] sm:$0xff]
        %v501 = vld [vmem:[%s299 + $0x20] sm:$0xff]
        %v502 = vld [vmem:[%s299 + $0x28] sm:$0xff]
        %v503 = vld [vmem:[%s299 + $0x30] sm:$0xff]
        %v504 = vld [vmem:[%s299 + $0x38] sm:$0xff]
        %v505 = vld [vmem:[%s299 + $0x40] sm:$0xff]
        %v506 = vld [vmem:[%s299 + $0x48] sm:$0xff]
        %v507 = vld [vmem:[%s299 + $0x50] sm:$0xff]
        %v508 = vld [vmem:[%s299 + $0x58] sm:$0xff]
        %v509 = vld [vmem:[%s299 + $0x60] sm:$0xff]
        %v510 = vld [vmem:[%s299 + $0x68] sm:$0xff]
        %v511 = vld [vmem:[%s299 + $0x70] sm:$0xff]
        %v512 = vld [vmem:[%s299 + $0x78] sm:$0xff]
        %v513 = vld [vmem:[%s299 + $0x80] sm:$0xff]
        %v514 = vld [vmem:[%s299 + $0x88] sm:$0xff]
        %v515 = vld [vmem:[%s299 + $0x90] sm:$0xff]
        %v516 = vld [vmem:[%s299 + $0x98] sm:$0xff]
        %v517 = vld [vmem:[%s299 + $0xa0] sm:$0xff]
        %v518 = vld [vmem:[%s299 + $0xa8] sm:$0xff]
        %v519 = vld [vmem:[%s299 + $0xb0] sm:$0xff]
        %v520 = vld [vmem:[%s299 + $0xb8] sm:$0xff]
        %v521 = vld [vmem:[%s299 + $0xc0] sm:$0xff]
        %v522 = vld [vmem:[%s299 + $0xc8] sm:$0xff]
        %v523 = vld [vmem:[%s299 + $0xd0] sm:$0xff]
        %v524 = vld [vmem:[%s299 + $0xd8] sm:$0xff]
        %v525 = vld [vmem:[%s299 + $0xe0] sm:$0xff]
        %v526 = vld [vmem:[%s299 + $0xe8] sm:$0xff]
        %v527 = vld [vmem:[%s299 + $0xf0] sm:$0xff]
        %v528 = vld [vmem:[%s299 + $0xf8] sm:$0xff]
        %v529 = vld [vmem:[%s299 + $0x100] sm:$0xff]
        %v530 = vld [vmem:[%s299 + $0x108] sm:$0xff]
        %v531 = vld [vmem:[%s299 + $0x110] sm:$0xff]
        %v532 = vld [vmem:[%s299 + $0x118] sm:$0xff]
        %v533 = vld [vmem:[%s299 + $0x120] sm:$0xff]
        %v534 = vld [vmem:[%s299 + $0x128] sm:$0xff]
        %v535 = vld [vmem:[%s299 + $0x130] sm:$0xff]
        %v536 = vld [vmem:[%s299 + $0x138] sm:$0xff]
        %v537 = vld [vmem:[%s299 + $0x140] sm:$0xff]
        %v538 = vld [vmem:[%s299 + $0x148] sm:$0xff]
        %v539 = vld [vmem:[%s299 + $0x150] sm:$0xff]
        %v540 = vld [vmem:[%s299 + $0x158] sm:$0xff]
        %v541 = vld [vmem:[%s299 + $0x160] sm:$0xff]
        %v542 = vld [vmem:[%s299 + $0x168] sm:$0xff]
        %v543 = vld [vmem:[%s299 + $0x170] sm:$0xff]
        %v544 = vld [vmem:[%s299 + $0x178] sm:$0xff]
        %v545 = vld [vmem:[%s299 + $0x180] sm:$0xff]
        %v546 = vld [vmem:[%s299 + $0x188] sm:$0xff]
        %v547 = vld [vmem:[%s299 + $0x190] sm:$0xff]
        %v548 = vld [vmem:[%s299 + $0x198] sm:$0xff]
        %v549 = vld [vmem:[%s299 + $0x1a0] sm:$0xff]
        %v550 = vld [vmem:[%s299 + $0x1a8] sm:$0xff]
        %v551 = vld [vmem:[%s299 + $0x1b0] sm:$0xff]
        %v552 = vld [vmem:[%s299 + $0x1b8] sm:$0xff]
        %v553 = vld [vmem:[%s299 + $0x1c0] sm:$0xff]
        %v554 = vld [vmem:[%s299 + $0x1c8] sm:$0xff]
        %v555 = vld [vmem:[%s299 + $0x1d0] sm:$0xff]
        %v556 = vld [vmem:[%s299 + $0x1d8] sm:$0xff]
        %v557 = vld [vmem:[%s299 + $0x1e0] sm:$0xff]
        %v558 = vld [vmem:[%s299 + $0x1e8] sm:$0xff]
        %v559 = vld [vmem:[%s299 + $0x1f0] sm:$0xff]
        %v560 = vld [vmem:[%s299 + $0x1f8] sm:$0xff]
        %v625 = vunpack.c.l.b16 %v497
        %v626 = vunpack.c.h.b16 %v497
        %v627 = vunpack.c.l.b16 %v498
        %v628 = vunpack.c.h.b16 %v498
        %v629 = vunpack.c.l.b16 %v499
        %v630 = vunpack.c.h.b16 %v499
        %v631 = vunpack.c.l.b16 %v500
        %v632 = vunpack.c.h.b16 %v500
        %v633 = vunpack.c.l.b16 %v501
        %v634 = vunpack.c.h.b16 %v501
        %v635 = vunpack.c.l.b16 %v502
        %v636 = vunpack.c.h.b16 %v502
        %v637 = vunpack.c.l.b16 %v503
        %v638 = vunpack.c.h.b16 %v503
        %v639 = vunpack.c.l.b16 %v504
        %v640 = vunpack.c.h.b16 %v504
        %v641 = vunpack.c.l.b16 %v505
        %v642 = vunpack.c.h.b16 %v505
        %v643 = vunpack.c.l.b16 %v506
        %v644 = vunpack.c.h.b16 %v506
        %v645 = vunpack.c.l.b16 %v507
        %v646 = vunpack.c.h.b16 %v507
        %v647 = vunpack.c.l.b16 %v508
        %v648 = vunpack.c.h.b16 %v508
        %v649 = vunpack.c.l.b16 %v509
        %v650 = vunpack.c.h.b16 %v509
        %v651 = vunpack.c.l.b16 %v510
        %v652 = vunpack.c.h.b16 %v510
        %v653 = vunpack.c.l.b16 %v511
        %v654 = vunpack.c.h.b16 %v511
        %v655 = vunpack.c.l.b16 %v512
        %v656 = vunpack.c.h.b16 %v512
        %v657 = vunpack.c.l.b16 %v513
        %v658 = vunpack.c.h.b16 %v513
        %v659 = vunpack.c.l.b16 %v514
        %v660 = vunpack.c.h.b16 %v514
        %v661 = vunpack.c.l.b16 %v515
        %v662 = vunpack.c.h.b16 %v515
        %v663 = vunpack.c.l.b16 %v516
        %v664 = vunpack.c.h.b16 %v516
        %v665 = vunpack.c.l.b16 %v517
        %v666 = vunpack.c.h.b16 %v517
        %v667 = vunpack.c.l.b16 %v518
        %v668 = vunpack.c.h.b16 %v518
        %v669 = vunpack.c.l.b16 %v519
        %v670 = vunpack.c.h.b16 %v519
        %v671 = vunpack.c.l.b16 %v520
        %v672 = vunpack.c.h.b16 %v520
        %v673 = vunpack.c.l.b16 %v521
        %v674 = vunpack.c.h.b16 %v521
        %v675 = vunpack.c.l.b16 %v522
        %v676 = vunpack.c.h.b16 %v522
        %v677 = vunpack.c.l.b16 %v523
        %v678 = vunpack.c.h.b16 %v523
        %v679 = vunpack.c.l.b16 %v524
        %v680 = vunpack.c.h.b16 %v524
        %v681 = vunpack.c.l.b16 %v525
        %v682 = vunpack.c.h.b16 %v525
        %v683 = vunpack.c.l.b16 %v526
        %v684 = vunpack.c.h.b16 %v526
        %v685 = vunpack.c.l.b16 %v527
        %v686 = vunpack.c.h.b16 %v527
        %v687 = vunpack.c.l.b16 %v528
        %v688 = vunpack.c.h.b16 %v528
        %v689 = vunpack.c.l.b16 %v529
        %v690 = vunpack.c.h.b16 %v529
        %v691 = vunpack.c.l.b16 %v530
        %v692 = vunpack.c.h.b16 %v530
        %v693 = vunpack.c.l.b16 %v531
        %v694 = vunpack.c.h.b16 %v531
        %v695 = vunpack.c.l.b16 %v532
        %v696 = vunpack.c.h.b16 %v532
        %v697 = vunpack.c.l.b16 %v533
        %v698 = vunpack.c.h.b16 %v533
        %v699 = vunpack.c.l.b16 %v534
        %v700 = vunpack.c.h.b16 %v534
        %v701 = vunpack.c.l.b16 %v535
        %v702 = vunpack.c.h.b16 %v535
        %v703 = vunpack.c.l.b16 %v536
        %v704 = vunpack.c.h.b16 %v536
        %v705 = vunpack.c.l.b16 %v537
        %v706 = vunpack.c.h.b16 %v537
        %v707 = vunpack.c.l.b16 %v538
        %v708 = vunpack.c.h.b16 %v538
        %v709 = vunpack.c.l.b16 %v539
        %v710 = vunpack.c.h.b16 %v539
        %v711 = vunpack.c.l.b16 %v540
        %v712 = vunpack.c.h.b16 %v540
        %v713 = vunpack.c.l.b16 %v541
        %v714 = vunpack.c.h.b16 %v541
        %v715 = vunpack.c.l.b16 %v542
        %v716 = vunpack.c.h.b16 %v542
        %v717 = vunpack.c.l.b16 %v543
        %v718 = vunpack.c.h.b16 %v543
        %v719 = vunpack.c.l.b16 %v544
        %v720 = vunpack.c.h.b16 %v544
        %v721 = vunpack.c.l.b16 %v545
        %v722 = vunpack.c.h.b16 %v545
        %v723 = vunpack.c.l.b16 %v546
        %v724 = vunpack.c.h.b16 %v546
        %v725 = vunpack.c.l.b16 %v547
        %v726 = vunpack.c.h.b16 %v547
        %v727 = vunpack.c.l.b16 %v548
        %v728 = vunpack.c.h.b16 %v548
        %v729 = vunpack.c.l.b16 %v549
        %v730 = vunpack.c.h.b16 %v549
        %v731 = vunpack.c.l.b16 %v550
        %v732 = vunpack.c.h.b16 %v550
        %v733 = vunpack.c.l.b16 %v551
        %v734 = vunpack.c.h.b16 %v551
        %v735 = vunpack.c.l.b16 %v552
        %v736 = vunpack.c.h.b16 %v552
        %v737 = vunpack.c.l.b16 %v553
        %v738 = vunpack.c.h.b16 %v553
        %v739 = vunpack.c.l.b16 %v554
        %v740 = vunpack.c.h.b16 %v554
        %v741 = vunpack.c.l.b16 %v555
        %v742 = vunpack.c.h.b16 %v555
        %v743 = vunpack.c.l.b16 %v556
        %v744 = vunpack.c.h.b16 %v556
        %v745 = vunpack.c.l.b16 %v557
        %v746 = vunpack.c.h.b16 %v557
        %v747 = vunpack.c.l.b16 %v558
        %v748 = vunpack.c.h.b16 %v558
        %v749 = vunpack.c.l.b16 %v559
        %v750 = vunpack.c.h.b16 %v559
        %v751 = vunpack.c.l.b16 %v560
        %v752 = vunpack.c.h.b16 %v560
        %v753 = vpack.c.b16 %v629, %v625
        %v754 = vpack.c.b16 %v630, %v626
        %v755 = vpack.c.b16 %v631, %v627
        %v756 = vpack.c.b16 %v632, %v628
        %v757 = vpack.c.b16 %v637, %v633
        %v758 = vpack.c.b16 %v638, %v634
        %v759 = vpack.c.b16 %v639, %v635
        %v760 = vpack.c.b16 %v640, %v636
        %v761 = vpack.c.b16 %v645, %v641
        %v762 = vpack.c.b16 %v646, %v642
        %v763 = vpack.c.b16 %v647, %v643
        %v764 = vpack.c.b16 %v648, %v644
        %v765 = vpack.c.b16 %v653, %v649
        %v766 = vpack.c.b16 %v654, %v650
        %v767 = vpack.c.b16 %v655, %v651
        %v768 = vpack.c.b16 %v656, %v652
        %v769 = vpack.c.b16 %v661, %v657
        %v770 = vpack.c.b16 %v662, %v658
        %v771 = vpack.c.b16 %v663, %v659
        %v772 = vpack.c.b16 %v664, %v660
        %v773 = vpack.c.b16 %v669, %v665
        %v774 = vpack.c.b16 %v670, %v666
        %v775 = vpack.c.b16 %v671, %v667
        %v776 = vpack.c.b16 %v672, %v668
        %v777 = vpack.c.b16 %v677, %v673
        %v778 = vpack.c.b16 %v678, %v674
        %v779 = vpack.c.b16 %v679, %v675
        %v780 = vpack.c.b16 %v680, %v676
        %v781 = vpack.c.b16 %v685, %v681
        %v782 = vpack.c.b16 %v686, %v682
        %v783 = vpack.c.b16 %v687, %v683
        %v784 = vpack.c.b16 %v688, %v684
        %v785 = vpack.c.b16 %v693, %v689
        %v786 = vpack.c.b16 %v694, %v690
        %v787 = vpack.c.b16 %v695, %v691
        %v788 = vpack.c.b16 %v696, %v692
        %v789 = vpack.c.b16 %v701, %v697
        %v790 = vpack.c.b16 %v702, %v698
        %v791 = vpack.c.b16 %v703, %v699
        %v792 = vpack.c.b16 %v704, %v700
        %v793 = vpack.c.b16 %v709, %v705
        %v794 = vpack.c.b16 %v710, %v706
        %v795 = vpack.c.b16 %v711, %v707
        %v796 = vpack.c.b16 %v712, %v708
        %v797 = vpack.c.b16 %v717, %v713
        %v798 = vpack.c.b16 %v718, %v714
        %v799 = vpack.c.b16 %v719, %v715
        %v800 = vpack.c.b16 %v720, %v716
        %v801 = vpack.c.b16 %v725, %v721
        %v802 = vpack.c.b16 %v726, %v722
        %v803 = vpack.c.b16 %v727, %v723
        %v804 = vpack.c.b16 %v728, %v724
        %v805 = vpack.c.b16 %v733, %v729
        %v806 = vpack.c.b16 %v734, %v730
        %v807 = vpack.c.b16 %v735, %v731
        %v808 = vpack.c.b16 %v736, %v732
        %v809 = vpack.c.b16 %v741, %v737
        %v810 = vpack.c.b16 %v742, %v738
        %v811 = vpack.c.b16 %v743, %v739
        %v812 = vpack.c.b16 %v744, %v740
        %v813 = vpack.c.b16 %v749, %v745
        %v814 = vpack.c.b16 %v750, %v746
        %v815 = vpack.c.b16 %v751, %v747
        %v816 = vpack.c.b16 %v752, %v748
        %881 = vmatprep.subr.bf16.mxu0 %v754
        %882 = vmatpush1.bf16.msra.mxu0 %v753
        %883 = vmatprep.subr.bf16.mxu0 %v758
        %884 = vmatpush1.bf16.msra.mxu0 %v757
        %885 = vmatprep.subr.bf16.mxu0 %v762
        %886 = vmatpush1.bf16.msra.mxu0 %v761
        %887 = vmatprep.subr.bf16.mxu0 %v766
        %888 = vmatpush1.bf16.msra.mxu0 %v765
        %889 = vmatprep.subr.bf16.mxu0 %v770
        %890 = vmatpush1.bf16.msra.mxu0 %v769
        %891 = vmatprep.subr.bf16.mxu0 %v774
        %892 = vmatpush1.bf16.msra.mxu0 %v773
        %893 = vmatprep.subr.bf16.mxu0 %v778
        %894 = vmatpush1.bf16.msra.mxu0 %v777
        %895 = vmatprep.subr.bf16.mxu0 %v782
        %896 = vmatpush1.bf16.msra.mxu0 %v781
        %897 = vmatprep.subr.bf16.mxu0 %v786
        %898 = vmatpush1.bf16.msra.mxu0 %v785
        %899 = vmatprep.subr.bf16.mxu0 %v790
        %900 = vmatpush1.bf16.msra.mxu0 %v789
        %901 = vmatprep.subr.bf16.mxu0 %v794
        %902 = vmatpush1.bf16.msra.mxu0 %v793
        %903 = vmatprep.subr.bf16.mxu0 %v798
        %904 = vmatpush1.bf16.msra.mxu0 %v797
        %905 = vmatprep.subr.bf16.mxu0 %v802
        %906 = vmatpush1.bf16.msra.mxu0 %v801
        %907 = vmatprep.subr.bf16.mxu0 %v806
        %908 = vmatpush1.bf16.msra.mxu0 %v805
        %909 = vmatprep.subr.bf16.mxu0 %v810
        %910 = vmatpush1.bf16.msra.mxu0 %v809
        %911 = vmatprep.subr.bf16.mxu0 %v814
        %912 = vmatpush1.bf16.msra.mxu0 %v813
        %913 = vmatprep.mubr.bf16.mxu0 %v496
        %914 = vmatmul.mubr.bf16.gmra.mrb[0].mxu0 %v495
        %v915 = vpop.f32.mrb[0].mxu0
        %v916 = vadd.f32 0.0, %v915
        %v917 = vpop.f32.mrb[0].mxu0
        %v918 = vadd.f32 0.0, %v917
        %v919 = vpop.f32.mrb[0].mxu0
        %v920 = vpop.f32.mrb[0].mxu0
        %921 = vdwg.mxu0
        %922 = vmatprep.subr.bf16.mxu0 %v756
        %923 = vmatpush1.bf16.msra.mxu0 %v755
        %924 = vmatprep.subr.bf16.mxu0 %v760
        %925 = vmatpush1.bf16.msra.mxu0 %v759
        %926 = vmatprep.subr.bf16.mxu0 %v764
        %927 = vmatpush1.bf16.msra.mxu0 %v763
        %928 = vmatprep.subr.bf16.mxu0 %v768
        %929 = vmatpush1.bf16.msra.mxu0 %v767
        %930 = vmatprep.subr.bf16.mxu0 %v772
        %931 = vmatpush1.bf16.msra.mxu0 %v771
        %932 = vmatprep.subr.bf16.mxu0 %v776
        %933 = vmatpush1.bf16.msra.mxu0 %v775
        %934 = vmatprep.subr.bf16.mxu0 %v780
        %935 = vmatpush1.bf16.msra.mxu0 %v779
        %936 = vmatprep.subr.bf16.mxu0 %v784
        %937 = vmatpush1.bf16.msra.mxu0 %v783
        %938 = vmatprep.subr.bf16.mxu0 %v788
        %939 = vmatpush1.bf16.msra.mxu0 %v787
        %940 = vmatprep.subr.bf16.mxu0 %v792
        %941 = vmatpush1.bf16.msra.mxu0 %v791
        %942 = vmatprep.subr.bf16.mxu0 %v796
        %943 = vmatpush1.bf16.msra.mxu0 %v795
        %944 = vmatprep.subr.bf16.mxu0 %v800
        %945 = vmatpush1.bf16.msra.mxu0 %v799
        %946 = vmatprep.subr.bf16.mxu0 %v804
        %947 = vmatpush1.bf16.msra.mxu0 %v803
        %948 = vmatprep.subr.bf16.mxu0 %v808
        %949 = vmatpush1.bf16.msra.mxu0 %v807
        %950 = vmatprep.subr.bf16.mxu0 %v812
        %951 = vmatpush1.bf16.msra.mxu0 %v811
        %952 = vmatprep.subr.bf16.mxu0 %v816
        %953 = vmatpush1.bf16.msra.mxu0 %v815
        %954 = vmatprep.mubr.bf16.mxu0 %v496
        %955 = vmatmul.mubr.bf16.gmra.mrb[0].mxu0 %v495
        %v956 = vpop.f32.mrb[0].mxu0
        %v957 = vadd.f32 0.0, %v956
        %v958 = vpop.f32.mrb[0].mxu0
        %v959 = vadd.f32 0.0, %v958
        %v960 = vpop.f32.mrb[0].mxu0
        %v961 = vpop.f32.mrb[0].mxu0
        %962 = vdwg.mxu0
        %v967 = vcombine.low %v916, %v918
        %v968 = vcombine.low %v957, %v959
        %v970 = vunpack.c.l.s4 1983009808
        %v971 = vunpack.c.0.s8 %v970
        %v972 = vlaneseq
        %v973 = vshrl.u32 %v972, 7
        %v974 = vsub.s32 %v971, %v973
        %v975 = vrot.slane %v967, %v974
        %v977 = vunpack.c.l.s4 1983009808
        %v978 = vunpack.c.0.s8 %v977
        %v979 = vlaneseq
        %v980 = vshrl.u32 %v979, 7
        %v981 = vsub.s32 %v978, %v980
        %v982 = vrot.slane %v968, %v981
        %v983 = vcombine.low %v975, %v982
        %v985 = vadd.f32 %v494, %v983
        %986 = vst [vmem:[#allocation2] sm:$0xff] %v985
        %p987 = scmp.eq.s32.totalorder %s26, 7
        // Predicated region
        $region73: #{value_head_forward.1} parent=47 // pred_check
          %p988 = pneg %p987
        $region74: #{value_head_forward.1} parent=47 // pred_check_branch
          %990 = sbr.rel (%p988) target = $region76
        $region75: #{value_head_forward.1} parent=47 // pred_region
          %v991 = vld [vmem:[#allocation2] sm:$0xff]
          %v992 = vld [vmem:[#allocation10] sm:$0xf]
          %v994 = vlaneseq
          %v995 = vshrl.u32 %v994, 7
          %v996 = vsub.s32 0, %v995
          %v997 = vrot.slane %v992, %v996
          %v998 = vlaneseq
          %v999 = vshrl.u32 %v998, 7
          %v1000 = vsub.s32 1, %v999
          %v1001 = vrot.slane %v992, %v1000
          %v1002 = vlaneseq
          %v1003 = vshrl.u32 %v1002, 7
          %v1004 = vsub.s32 2, %v1003
          %v1005 = vrot.slane %v992, %v1004
          %v1006 = vlaneseq
          %v1007 = vshrl.u32 %v1006, 7
          %v1008 = vsub.s32 3, %v1007
          %v1009 = vrot.slane %v992, %v1008
          %v1010 = vcombine.low %v997, %v1001
          %v1011 = vcombine.low %v1005, %v1009
          %v1013 = vunpack.c.l.s4 1983009808
          %v1014 = vunpack.c.0.s8 %v1013
          %v1015 = vlaneseq
          %v1016 = vshrl.u32 %v1015, 7
          %v1017 = vsub.s32 %v1014, %v1016
          %v1018 = vrot.slane %v1010, %v1017
          %v1020 = vunpack.c.l.s4 1983009808
          %v1021 = vunpack.c.0.s8 %v1020
          %v1022 = vlaneseq
          %v1023 = vshrl.u32 %v1022, 7
          %v1024 = vsub.s32 %v1021, %v1023
          %v1025 = vrot.slane %v1011, %v1024
          %v1026 = vcombine.low %v1018, %v1025
          %v1028 = vadd.f32 %v991, %v1026
          %v1029 = vmax.f32 %v1028, 0.0
          %v1030 = vld [vmem:[#allocation12] sm:$0xf]
          %v1032 = vlaneseq
          %v1033 = vshrl.u32 %v1032, 7
          %v1034 = vsub.s32 0, %v1033
          %v1035 = vrot.slane %v1030, %v1034
          %v1036 = vlaneseq
          %v1037 = vshrl.u32 %v1036, 7
          %v1038 = vsub.s32 1, %v1037
          %v1039 = vrot.slane %v1030, %v1038
          %v1040 = vlaneseq
          %v1041 = vshrl.u32 %v1040, 7
          %v1042 = vsub.s32 2, %v1041
          %v1043 = vrot.slane %v1030, %v1042
          %v1044 = vlaneseq
          %v1045 = vshrl.u32 %v1044, 7
          %v1046 = vsub.s32 3, %v1045
          %v1047 = vrot.slane %v1030, %v1046
          %v1048 = vcombine.low %v1035, %v1039
          %v1049 = vcombine.low %v1043, %v1047
          %v1051 = vunpack.c.l.s4 1983009808
          %v1052 = vunpack.c.0.s8 %v1051
          %v1053 = vlaneseq
          %v1054 = vshrl.u32 %v1053, 7
          %v1055 = vsub.s32 %v1052, %v1054
          %v1056 = vrot.slane %v1048, %v1055
          %v1058 = vunpack.c.l.s4 1983009808
          %v1059 = vunpack.c.0.s8 %v1058
          %v1060 = vlaneseq
          %v1061 = vshrl.u32 %v1060, 7
          %v1062 = vsub.s32 %v1059, %v1061
          %v1063 = vrot.slane %v1049, %v1062
          %v1064 = vcombine.low %v1056, %v1063
          %v1066 = vmul.f32 %v1029, %v1064
          %v1068 = vcombine.high %v1066, %v1066
          %v1070 = vunpack.c.l.s4 1983009808
          %v1071 = vunpack.c.0.s8 %v1070
          %v1072 = vlaneseq
          %v1073 = vshrl.u32 %v1072, 7
          %v1074 = vsub.s32 %v1071, %v1073
          %v1075 = vrot.slane %v1066, %v1074
          %v1077 = vunpack.c.l.s4 1983009808
          %v1078 = vunpack.c.0.s8 %v1077
          %v1079 = vlaneseq
          %v1080 = vshrl.u32 %v1079, 7
          %v1081 = vsub.s32 %v1078, %v1080
          %v1082 = vrot.slane %v1068, %v1081
          %v1083 = vcombine.high %v1075, %v1075
          %v1084 = vcombine.high %v1082, %v1082
          %vm1089 = vcmask 1041408
          %v1090 = vsel %vm1089, %v1075, 0.0
          %v1091 = vsel %vm1089, %v1083, 0.0
          %v1092 = vadd.f32 %v1090, %v1091
          %v1093 = vsel %vm1089, %v1082, 0.0
          %v1094 = vadd.f32 %v1092, %v1093
          %v1095 = vsel %vm1089, %v1084, 0.0
          %v1096 = vadd.f32 %v1094, %v1095
          %1097 = vadd.xlane.f32.xlu0 %v1096
          %v1098 = vpop.xlane.xlu0 %1097
          %v1099 = vld [vmem:[#allocation3] sm:$0x1]
          %v1101 = vlaneseq
          %v1102 = vshrl.u32 %v1101, 7
          %v1103 = vsub.s32 0, %v1102
          %v1104 = vrot.slane %v1099, %v1103
          %v1106 = vadd.f32 %v1098, %v1104
          %v1107 = vtanh.pop %v1106
          %vm1108 = vcmask 1024
          %1109 = vst.msk [vmem:[%s7] sm:$0x3] %vm1108, %v1107
        $region76: #{value_head_forward.1} parent=47 // pred_fallthru
          _
        // Predicated region
        $region77: #{value_head_forward.1} parent=47 // pred_check
          %p1110 = pneg %p191
        $region78: #{value_head_forward.1} parent=47 // pred_check_branch
          %1112 = sbr.rel (%p1110) target = $region80
        $region79: #{value_head_forward.1} parent=47 // pred_region
          _
        $region80: #{value_head_forward.1} parent=47 // pred_fallthru
          _
        // Predicated region
        $region81: #{value_head_forward.1} parent=47 // pred_check
          %p1113 = pneg %p191
        $region82: #{value_head_forward.1} parent=47 // pred_check_branch
          %1115 = sbr.rel (%p1113) target = $region84
        $region83: #{value_head_forward.1} parent=47 // pred_region
          _
        $region84: #{value_head_forward.1} parent=47 // pred_fallthru
          _
      $region48: #{value_head_forward.1} parent=5 // pred_fallthru
        _
      %p1116 = scmp.le.s32.totalorder 2, %s21
      // Predicated region
      $region85: #{value_head_forward.1} parent=5 // pred_check
        %p1117 = pneg %p1116
      $region86: #{value_head_forward.1} parent=5 // pred_check_branch
        %1119 = sbr.rel (%p1117) target = $region88
      $region87: #{value_head_forward.1} parent=5 // pred_region
        %s1120 = ssub.s32 %s21, 2
      $region88: #{value_head_forward.1} parent=5 // pred_fallthru
        _
    $region6: #{value_head_forward.1} parent=1 // loop_footer
      %s25 = sadd.s32 1, %s21
    $region7: #{value_head_forward.1} parent=1 // loop_footer_branch
      %20 = sbr.rel target = $region3
    $region8: #{value_head_forward.1} parent=1 // loop_exit
      _
    %1121 = vsyncpa [#allocation5], 1
    %s1122 = scalar_lea.sflag [#allocation5], 1
    %1123 = vsyncpa %s1122, 1
    %1124 = vsyncpa [#allocation11], 1
    %1125 = vsyncpa [#allocation6], 1
    %s1126 = scalar_lea.sflag [#allocation6], 1
    %1127 = vsyncpa %s1126, 1
    %1128 = vsyncpa [#allocation8], 1

</llo_original>
